<compile_context>
chip_gen: v7x
topology: tpu7x:2x2x1
jax: 0.10.0
libtpu: 0.0.40
codegen_flags: <defaults>
</compile_context>

<pallas_src>
import functools

import jax
import jax.numpy as jnp
from jax import lax
from jax.experimental import pallas as pl
from jax.experimental.pallas import tpu as pltpu


def _round_up(x, m):
    return (x + m - 1) // m * m


def _infonce_gram_kernel(g_ref, opt_ref, neg_ref, out_ref,
                         m_ref, sexp_ref, slog_ref,
                         *, b, d, n, tile_n, mask_rows, mask_cols, compute_dtype):
    """Grid axis j streams negative-column tiles; finalize handles opt columns.

    g_ref   : (B_pad, B_pad) compute dtype   Gram matrix ipt @ ipt.T (zero padded)
    opt_ref : (B_pad, D)     f32             resident positive columns
    neg_ref : (B_pad, tile_n) f32            negative column tile j
    out_ref : (1, 1)          f32            scalar loss
    m_ref / sexp_ref / slog_ref : (1, tile_n) f32  per-lane online-softmax state
    """
    j = pl.program_id(0)
    last = pl.num_programs(0) - 1

    @pl.when(j == 0)
    def _init():
        m_ref[...] = jnp.zeros_like(m_ref)       # logits >= 0, so 0 is a safe floor
        sexp_ref[...] = jnp.zeros_like(sexp_ref)
        slog_ref[...] = jnp.zeros_like(slog_ref)

    g = g_ref[...]                                # small, resident

    def column_logits(r):
        """||ipt.T @ c|| / 100 for every column c of r, via the Gram form c^T G c."""
        if mask_rows:                             # rows >= b are uninitialized VMEM
            row = lax.broadcasted_iota(jnp.int32, r.shape, 0)
            r = jnp.where(row < b, r, 0.0)
        p = jnp.dot(g, r.astype(compute_dtype), preferred_element_type=jnp.float32)
        sumsq = jnp.sum(r * p, axis=0, keepdims=True)        # (1, width) f32
        return jnp.sqrt(sumsq) * (1.0 / 100.0)

    # ---- streamed negative tile: per-lane online (max-rescaled) accumulation ----
    logit = column_logits(neg_ref[...])           # (1, tile_n)
    if mask_cols:                                 # ragged last tile: mask cols >= n
        col = j * tile_n + lax.broadcasted_iota(jnp.int32, (1, tile_n), 1)
        valid = col < n
        logit_for_max = jnp.where(valid, logit, 0.0)
    else:
        valid = None
        logit_for_max = logit

    m_old = m_ref[...]
    m_new = jnp.maximum(m_old, logit_for_max)
    alpha = jnp.exp(m_old - m_new)
    e = jnp.exp(logit - m_new)
    lg = logit
    if mask_cols:
        e = jnp.where(valid, e, 0.0)
        lg = jnp.where(valid, logit, 0.0)
    sexp_ref[...] = alpha * sexp_ref[...] + e
    slog_ref[...] = slog_ref[...] + lg
    m_ref[...] = m_new

    # ---- finalize: positive (opt) columns + loss, once all negatives are in ----
    @pl.when(j == last)
    def _finalize():
        mn = jnp.max(m_ref[...], axis=1, keepdims=True)                       # (1,1)
        s_exp = jnp.sum(sexp_ref[...] * jnp.exp(m_ref[...] - mn),
                        axis=1, keepdims=True)                                # (1,1)
        s_log = jnp.sum(slog_ref[...], axis=1, keepdims=True)                 # (1,1)

        lo = column_logits(opt_ref[...])                                      # (1, d)
        # denominator_i = exp(lo_i) + sum_k exp(logit_neg_k) + 1e-12, in log space.
        # a >= 1 so the reference's +1e-12 on the numerator is below f32 ulp and
        # log(numerator) == lo_i directly.
        mi = jnp.maximum(lo, mn)
        log_denom = mi + jnp.log(jnp.exp(lo - mi)
                                 + s_exp * jnp.exp(mn - mi)
                                 + 1e-12 * jnp.exp(-mi))
        ln_sub = lo + s_log - (n + 1.0) * log_denom                           # (1, d)
        out_ref[...] = -jnp.sum(ln_sub, axis=1, keepdims=True) / (d * (n + 1.0))


@functools.partial(jax.jit, static_argnames=("mxu_dtype", "tile_n_max"))
def infonce_forward(opt, neg_batch, ipt_batch, *, mxu_dtype=jnp.bfloat16,
                    tile_n_max=512):
    B, D = opt.shape
    N = neg_batch.shape[1]

    B_pad = _round_up(B, 8)                       # f32 sublane tile

    # Gram matrix (B x B): one tiny XLA matmul; padded rows/cols are zero so they
    # contribute nothing to the quadratic forms.
    g = jnp.dot(ipt_batch, ipt_batch.T, preferred_element_type=jnp.float32)
    g = jnp.pad(g, ((0, B_pad - B), (0, B_pad - B))).astype(mxu_dtype)

    # Column tiling of the negative batch (lane-dense tiles when multi-tile).
    if N <= tile_n_max:
        tile_n = N                                # single full-extent block (legal)
    else:
        tile_n = max(128, (tile_n_max // 128) * 128)
    n_tiles = pl.cdiv(N, tile_n)
    mask_cols = (N % tile_n) != 0
    mask_rows = B_pad != B

    kernel = functools.partial(
        _infonce_gram_kernel, b=B, d=D, n=N, tile_n=tile_n,
        mask_rows=mask_rows, mask_cols=mask_cols, compute_dtype=mxu_dtype)

    # VMEM budget: double-buffered inputs + f32 intermediates, clamped to capacity.
    cdt = jnp.dtype(mxu_dtype).itemsize
    need = (2 * B_pad * B_pad * cdt              # G (resident)
            + 2 * B_pad * D * 4                  # opt (resident, f32)
            + 2 * B_pad * tile_n * 4             # neg tiles (double buffered, f32)
            + 2 * B_pad * max(tile_n, D) * 4     # f32 matmul product / temporaries
            + 16 * max(tile_n, D) * 4)           # accumulators / row vectors
    try:
        capacity = int(pltpu.get_tpu_info().vmem_capacity_bytes)
    except Exception:
        capacity = 64 * 1024 * 1024
    vmem_limit = int(min(int(0.8 * capacity),
                         max(16 * 1024 * 1024, 2 * need + (2 << 20))))

    out = pl.pallas_call(
        kernel,
        out_shape=jax.ShapeDtypeStruct((1, 1), jnp.float32),
        grid_spec=pltpu.PrefetchScalarGridSpec(
            num_scalar_prefetch=0,
            grid=(n_tiles,),
            in_specs=[
                pl.BlockSpec((B_pad, B_pad), lambda j: (0, 0)),    # G (resident)
                pl.BlockSpec((B_pad, D), lambda j: (0, 0)),        # opt (resident)
                pl.BlockSpec((B_pad, tile_n), lambda j: (0, j)),   # neg column tiles
            ],
            out_specs=pl.BlockSpec((1, 1), lambda j: (0, 0)),
            scratch_shapes=[pltpu.VMEM((1, tile_n), jnp.float32)] * 3,
        ),
        compiler_params=pltpu.CompilerParams(
            dimension_semantics=("arbitrary",),   # column axis is a reduction
            vmem_limit_bytes=vmem_limit,
        ),
    )(g, opt, neg_batch)
    return out[0, 0]


class InfoNCE:
    """JAX/Pallas mirror of the PyTorch infoNCE module."""

    def __init__(self, num_of_img, num_of_neg, key):
        self.q = num_of_neg // num_of_img
        self.num_of_neg = num_of_neg
        # W is created in the PyTorch __init__ but never used in forward.
        self.W = jax.random.normal(
            key, (self.q + 1, num_of_img, num_of_img), jnp.float32)

    def __call__(self, opt, ipt_batch, neg_key, *, mxu_dtype=jnp.bfloat16):
        batchsize, _ = opt.shape
        # TODO(synk): PyTorch draws neg_batch from the global CUDA RNG; here we use an
        # explicit jax.random key.  For very large num_of_neg the draw could move
        # in-kernel (pltpu.prng_seed + pltpu.stateful_normal) to skip the HBM
        # round-trip; it is kept in the wrapper so the exact sample can be verified.
        neg_batch = jax.random.normal(
            neg_key, (batchsize, self.num_of_neg), jnp.float32)
        loss = infonce_forward(opt, neg_batch, ipt_batch, mxu_dtype=mxu_dtype)
        return loss, neg_batch


def _reference_forward(opt, neg_batch, ipt_batch):
    """Pure-JAX transcription of the original per-column PyTorch loops."""
    batchsize, d = opt.shape
    num_of_neg = neg_batch.shape[1]
    Ln = 0.0
    for i in range(d):
        neg_opt_batch = jnp.concatenate([opt[:, i:i + 1], neg_batch], axis=1)
        a = [
            jnp.exp(jnp.linalg.norm(ipt_batch.T @ neg_opt_batch[:, kk]) / 100)
            for kk in range(num_of_neg + 1)
        ]
        denominator = jnp.stack(a).sum() + 1e-12
        Ln_sub = 0.0
        for j in range(num_of_neg + 1):
            numerator = a[j] + 1e-12
            Ln_sub += jnp.log(numerator / denominator)
        Ln += Ln_sub / (num_of_neg + 1)
    return -Ln / d


def _reference_forward_vec(opt, neg_batch, ipt_batch):
    """Vectorized reference (same math), used for larger test shapes."""
    d = opt.shape[1]
    n = neg_batch.shape[1]
    norm_neg = jnp.linalg.norm(ipt_batch.T @ neg_batch, axis=0)
    norm_opt = jnp.linalg.norm(ipt_batch.T @ opt, axis=0)
    a_neg = jnp.exp(norm_neg / 100.0)
    a_opt = jnp.exp(norm_opt / 100.0)
    denom = a_opt + jnp.sum(a_neg) + 1e-12
    ln_sub = (jnp.log(a_opt + 1e-12) + jnp.sum(jnp.log(a_neg + 1e-12))
              - (n + 1.0) * jnp.log(denom))
    return -jnp.sum(ln_sub) / ((n + 1.0) * d)


if __name__ == "__main__":
    key = jax.random.PRNGKey(0)
    k_w, k_opt, k_ipt, k_neg = jax.random.split(key, 4)

    B, D = 8, 16          # batchsize, d
    num_of_img = 4
    num_of_neg = 8

    model = InfoNCE(num_of_img, num_of_neg, k_w)

    opt = jax.random.normal(k_opt, (B, D), jnp.float32)
    ipt_batch = jax.random.normal(k_ipt, (B, D), jnp.float32)

    # f32 MXU path: faithful to the PyTorch math, checked tightly against the
    # loop-for-loop reference.
    loss_f32, neg_batch = model(opt, ipt_batch, k_neg, mxu_dtype=jnp.float32)
    loss_f32 = jax.block_until_ready(loss_f32)
    ref = _reference_forward(opt, neg_batch, ipt_batch)
    assert jnp.allclose(loss_f32, ref, rtol=1e-4, atol=1e-4), (loss_f32, ref)

    # bf16 MXU path (default): higher MXU throughput, f32 accumulation; looser check.
    loss_bf16, _ = model(opt, ipt_batch, k_neg, mxu_dtype=jnp.bfloat16)
    loss_bf16 = jax.block_until_ready(loss_bf16)
    assert jnp.allclose(loss_bf16, ref, rtol=5e-2, atol=5e-2), (loss_bf16, ref)

    # Misaligned / multi-tile config: exercises the column-tiled grid, ragged-tile
    # and padded-row masks, and the online max-rescaled accumulation across steps.
    B2, D2, N2 = 12, 24, 300
    k_o2, k_i2, k_n2 = jax.random.split(jax.random.PRNGKey(1), 3)
    opt2 = jax.random.normal(k_o2, (B2, D2), jnp.float32)
    ipt2 = jax.random.normal(k_i2, (B2, D2), jnp.float32)
    neg2 = jax.random.normal(k_n2, (B2, N2), jnp.float32)
    loss2 = infonce_forward(opt2, neg2, ipt2, mxu_dtype=jnp.float32, tile_n_max=128)
    loss2 = jax.block_until_ready(loss2)
    ref2 = _reference_forward_vec(opt2, neg2, ipt2)
    assert jnp.allclose(loss2, ref2, rtol=1e-3, atol=1e-3), (loss2, ref2)

    print("KERNEL_OK")
</pallas_src>

<mosaic_0001>
module attributes {stable_mosaic.version = 11 : i64} {
  func.func @_infonce_gram_kernel(%arg0: i32, %arg1: memref<8x8xf32, #tpu.memory_space<vmem>>, %arg2: memref<8x16xf32, #tpu.memory_space<vmem>>, %arg3: memref<8x8xf32, #tpu.memory_space<vmem>>, %arg4: memref<1x1xf32, #tpu.memory_space<vmem>>, %arg5: memref<1x8xf32, #tpu.memory_space<vmem>>, %arg6: memref<1x8xf32, #tpu.memory_space<vmem>>, %arg7: memref<1x8xf32, #tpu.memory_space<vmem>>) attributes {dimension_semantics = [#tpu.dimension_semantics<arbitrary>], iteration_bounds = array<i64: 1>, scalar_prefetch = 0 : i64, scratch_operands = 3 : i64, tpu.core_type = #tpu.core_type<tc>, window_params = [{pipeline_mode = #tpu.pipeline_mode<synchronous>, transform_indices = @transform_0, window_bounds = array<i64: 8, 8>}, {pipeline_mode = #tpu.pipeline_mode<synchronous>, transform_indices = @transform_1, window_bounds = array<i64: 8, 16>}, {transform_indices = @transform_2, window_bounds = array<i64: 8, 8>}, {pipeline_mode = #tpu.pipeline_mode<synchronous>, transform_indices = @transform_3, window_bounds = array<i64: 1, 1>}]} {
    %c0_i32 = arith.constant 0 : i32
    %0 = arith.cmpi eq, %arg0, %c0_i32 : i32
    %1 = arith.extui %0 : i1 to i32
    %c0_i32_0 = arith.constant 0 : i32
    %2 = arith.cmpi ne, %1, %c0_i32_0 : i32
    scf.if %2 {
      %cst_20 = arith.constant 0.000000e+00 : f32
      %29 = vector.broadcast %cst_20 : f32 to vector<1x8xf32>
      %c0_21 = arith.constant 0 : index
      %c0_22 = arith.constant 0 : index
      %30 = vector.load %arg5[%c0_21, %c0_22] : memref<1x8xf32, #tpu.memory_space<vmem>>, vector<1x8xf32>
      tpu.vector_store %arg5[%c0_21, %c0_22], %29 {strides = array<i32>} : memref<1x8xf32, #tpu.memory_space<vmem>>, vector<1x8xf32>,
      %cst_23 = arith.constant 0.000000e+00 : f32
      %31 = vector.broadcast %cst_23 : f32 to vector<1x8xf32>
      %c0_24 = arith.constant 0 : index
      %c0_25 = arith.constant 0 : index
      %32 = vector.load %arg6[%c0_24, %c0_25] : memref<1x8xf32, #tpu.memory_space<vmem>>, vector<1x8xf32>
      tpu.vector_store %arg6[%c0_24, %c0_25], %31 {strides = array<i32>} : memref<1x8xf32, #tpu.memory_space<vmem>>, vector<1x8xf32>,
      %cst_26 = arith.constant 0.000000e+00 : f32
      %33 = vector.broadcast %cst_26 : f32 to vector<1x8xf32>
      %c0_27 = arith.constant 0 : index
      %c0_28 = arith.constant 0 : index
      %34 = vector.load %arg7[%c0_27, %c0_28] : memref<1x8xf32, #tpu.memory_space<vmem>>, vector<1x8xf32>
      tpu.vector_store %arg7[%c0_27, %c0_28], %33 {strides = array<i32>} : memref<1x8xf32, #tpu.memory_space<vmem>>, vector<1x8xf32>,
    } else {
    }
    %c0 = arith.constant 0 : index
    %c0_1 = arith.constant 0 : index
    %3 = vector.load %arg1[%c0, %c0_1] : memref<8x8xf32, #tpu.memory_space<vmem>>, vector<8x8xf32>
    %c0_2 = arith.constant 0 : index
    %c0_3 = arith.constant 0 : index
    %4 = vector.load %arg3[%c0_2, %c0_3] : memref<8x8xf32, #tpu.memory_space<vmem>>, vector<8x8xf32>
    %cst = arith.constant dense<0.000000e+00> : vector<8x8xf32>
    %5 = tpu.matmul %3, %4, %cst {dimension_numbers = #tpu.dot_dimension_numbers<[1], [0], [0], [1], [0, 0, 1, 1], [], []>} : vector<8x8xf32>, vector<8x8xf32>, vector<8x8xf32> -> vector<8x8xf32>
    %6 = arith.mulf %4, %5 : vector<8x8xf32>
    %cst_4 = arith.constant dense<0.000000e+00> : vector<8xf32>
    %7 = vector.multi_reduction <add>, %6, %cst_4 [0] : vector<8x8xf32> to vector<8xf32>
    %8 = vector.shape_cast %7 : vector<8xf32> to vector<1x8xf32>
    %9 = math.sqrt %8 : vector<1x8xf32>
    %cst_5 = arith.constant 0.00999999977 : f32
    %10 = vector.broadcast %cst_5 : f32 to vector<1x8xf32>
    %11 = arith.mulf %9, %10 : vector<1x8xf32>
    %c0_6 = arith.constant 0 : index
    %c0_7 = arith.constant 0 : index
    %12 = vector.load %arg5[%c0_6, %c0_7] : memref<1x8xf32, #tpu.memory_space<vmem>>, vector<1x8xf32>
    %13 = arith.maximumf %12, %11 : vector<1x8xf32>
    %14 = arith.subf %12, %13 : vector<1x8xf32>
    %15 = math.exp %14 : vector<1x8xf32>
    %16 = arith.subf %11, %13 : vector<1x8xf32>
    %17 = math.exp %16 : vector<1x8xf32>
    %c0_8 = arith.constant 0 : index
    %c0_9 = arith.constant 0 : index
    %18 = vector.load %arg6[%c0_8, %c0_9] : memref<1x8xf32, #tpu.memory_space<vmem>>, vector<1x8xf32>
    %19 = arith.mulf %15, %18 : vector<1x8xf32>
    %20 = arith.addf %19, %17 : vector<1x8xf32>
    %c0_10 = arith.constant 0 : index
    %c0_11 = arith.constant 0 : index
    %21 = vector.load %arg6[%c0_10, %c0_11] : memref<1x8xf32, #tpu.memory_space<vmem>>, vector<1x8xf32>
    tpu.vector_store %arg6[%c0_10, %c0_11], %20 {strides = array<i32>} : memref<1x8xf32, #tpu.memory_space<vmem>>, vector<1x8xf32>,
    %c0_12 = arith.constant 0 : index
    %c0_13 = arith.constant 0 : index
    %22 = vector.load %arg7[%c0_12, %c0_13] : memref<1x8xf32, #tpu.memory_space<vmem>>, vector<1x8xf32>
    %23 = arith.addf %22, %11 : vector<1x8xf32>
    %c0_14 = arith.constant 0 : index
    %c0_15 = arith.constant 0 : index
    %24 = vector.load %arg7[%c0_14, %c0_15] : memref<1x8xf32, #tpu.memory_space<vmem>>, vector<1x8xf32>
    tpu.vector_store %arg7[%c0_14, %c0_15], %23 {strides = array<i32>} : memref<1x8xf32, #tpu.memory_space<vmem>>, vector<1x8xf32>,
    %c0_16 = arith.constant 0 : index
    %c0_17 = arith.constant 0 : index
    %25 = vector.load %arg5[%c0_16, %c0_17] : memref<1x8xf32, #tpu.memory_space<vmem>>, vector<1x8xf32>
    tpu.vector_store %arg5[%c0_16, %c0_17], %13 {strides = array<i32>} : memref<1x8xf32, #tpu.memory_space<vmem>>, vector<1x8xf32>,
    %c0_i32_18 = arith.constant 0 : i32
    %26 = arith.cmpi eq, %arg0, %c0_i32_18 : i32
    %27 = arith.extui %26 : i1 to i32
    %c0_i32_19 = arith.constant 0 : i32
    %28 = arith.cmpi ne, %27, %c0_i32_19 : i32
    scf.if %28 {
      %c0_20 = arith.constant 0 : index
      %c0_21 = arith.constant 0 : index
      %29 = vector.load %arg5[%c0_20, %c0_21] : memref<1x8xf32, #tpu.memory_space<vmem>>, vector<1x8xf32>
      %cst_22 = arith.constant dense<0xFF800000> : vector<1xf32>
      %30 = vector.multi_reduction <maximumf>, %29, %cst_22 [1] : vector<1x8xf32> to vector<1xf32>
      %31 = vector.shape_cast %30 : vector<1xf32> to vector<1x1xf32>
      %c0_23 = arith.constant 0 : index
      %c0_24 = arith.constant 0 : index
      %32 = vector.load %arg6[%c0_23, %c0_24] : memref<1x8xf32, #tpu.memory_space<vmem>>, vector<1x8xf32>
      %c0_25 = arith.constant 0 : index
      %c0_26 = arith.constant 0 : index
      %33 = vector.load %arg5[%c0_25, %c0_26] : memref<1x8xf32, #tpu.memory_space<vmem>>, vector<1x8xf32>
      %34 = vector.broadcast %31 : vector<1x1xf32> to vector<1x8xf32>
      %35 = arith.subf %33, %34 : vector<1x8xf32>
      %36 = math.exp %35 : vector<1x8xf32>
      %37 = arith.mulf %32, %36 : vector<1x8xf32>
      %cst_27 = arith.constant dense<0.000000e+00> : vector<1xf32>
      %38 = vector.multi_reduction <add>, %37, %cst_27 [1] : vector<1x8xf32> to vector<1xf32>
      %39 = vector.shape_cast %38 : vector<1xf32> to vector<1x1xf32>
      %c0_28 = arith.constant 0 : index
      %c0_29 = arith.constant 0 : index
      %40 = vector.load %arg7[%c0_28, %c0_29] : memref<1x8xf32, #tpu.memory_space<vmem>>, vector<1x8xf32>
      %cst_30 = arith.constant dense<0.000000e+00> : vector<1xf32>
      %41 = vector.multi_reduction <add>, %40, %cst_30 [1] : vector<1x8xf32> to vector<1xf32>
      %42 = vector.shape_cast %41 : vector<1xf32> to vector<1x1xf32>
      %c0_31 = arith.constant 0 : index
      %c0_32 = arith.constant 0 : index
      %43 = vector.load %arg2[%c0_31, %c0_32] : memref<8x16xf32, #tpu.memory_space<vmem>>, vector<8x16xf32>
      %cst_33 = arith.constant dense<0.000000e+00> : vector<8x16xf32>
      %44 = tpu.matmul %3, %43, %cst_33 {dimension_numbers = #tpu.dot_dimension_numbers<[1], [0], [0], [1], [0, 0, 1, 1], [], []>} : vector<8x8xf32>, vector<8x16xf32>, vector<8x16xf32> -> vector<8x16xf32>
      %45 = arith.mulf %43, %44 : vector<8x16xf32>
      %cst_34 = arith.constant dense<0.000000e+00> : vector<16xf32>
      %46 = vector.multi_reduction <add>, %45, %cst_34 [0] : vector<8x16xf32> to vector<16xf32>
      %47 = vector.shape_cast %46 : vector<16xf32> to vector<1x16xf32>
      %48 = math.sqrt %47 : vector<1x16xf32>
      %cst_35 = arith.constant 0.00999999977 : f32
      %49 = vector.broadcast %cst_35 : f32 to vector<1x16xf32>
      %50 = arith.mulf %48, %49 : vector<1x16xf32>
      %51 = vector.broadcast %31 : vector<1x1xf32> to vector<1x16xf32>
      %52 = arith.maximumf %50, %51 : vector<1x16xf32>
      %53 = arith.subf %50, %52 : vector<1x16xf32>
      %54 = math.exp %53 : vector<1x16xf32>
      %55 = vector.broadcast %31 : vector<1x1xf32> to vector<1x16xf32>
      %56 = arith.subf %55, %52 : vector<1x16xf32>
      %57 = math.exp %56 : vector<1x16xf32>
      %58 = vector.broadcast %39 : vector<1x1xf32> to vector<1x16xf32>
      %59 = arith.mulf %58, %57 : vector<1x16xf32>
      %60 = arith.addf %54, %59 : vector<1x16xf32>
      %cst_36 = arith.constant 0.000000e+00 : f32
      %61 = vector.broadcast %cst_36 : f32 to vector<1x16xf32>
      %62 = arith.subf %61, %52 : vector<1x16xf32>
      %63 = math.exp %62 : vector<1x16xf32>
      %cst_37 = arith.constant 9.99999996E-13 : f32
      %64 = vector.broadcast %cst_37 : f32 to vector<1x16xf32>
      %65 = arith.mulf %64, %63 : vector<1x16xf32>
      %66 = arith.addf %60, %65 : vector<1x16xf32>
      %67 = math.log %66 : vector<1x16xf32>
      %68 = arith.addf %52, %67 : vector<1x16xf32>
      %69 = vector.broadcast %42 : vector<1x1xf32> to vector<1x16xf32>
      %70 = arith.addf %50, %69 : vector<1x16xf32>
      %cst_38 = arith.constant 9.000000e+00 : f32
      %71 = vector.broadcast %cst_38 : f32 to vector<1x16xf32>
      %72 = arith.mulf %71, %68 : vector<1x16xf32>
      %73 = arith.subf %70, %72 : vector<1x16xf32>
      %cst_39 = arith.constant dense<0.000000e+00> : vector<1xf32>
      %74 = vector.multi_reduction <add>, %73, %cst_39 [1] : vector<1x16xf32> to vector<1xf32>
      %75 = vector.shape_cast %74 : vector<1xf32> to vector<1x1xf32>
      %cst_40 = arith.constant 0.000000e+00 : f32
      %76 = vector.broadcast %cst_40 : f32 to vector<1x1xf32>
      %77 = arith.subf %76, %75 : vector<1x1xf32>
      %cst_41 = arith.constant 1.440000e+02 : f32
      %78 = vector.broadcast %cst_41 : f32 to vector<1x1xf32>
      %79 = arith.divf %77, %78 : vector<1x1xf32>
      %c0_42 = arith.constant 0 : index
      %c0_43 = arith.constant 0 : index
      %80 = vector.load %arg4[%c0_42, %c0_43] : memref<1x1xf32, #tpu.memory_space<vmem>>, vector<1x1xf32>
      tpu.vector_store %arg4[%c0_42, %c0_43], %79 {strides = array<i32>} : memref<1x1xf32, #tpu.memory_space<vmem>>, vector<1x1xf32>,
    } else {
    }
    return
  }
  func.func @transform_0(%arg0: i32) -> (i32, i32) {
    %c0_i32 = arith.constant 0 : i32
    %c0_i32_0 = arith.constant 0 : i32
    %c0_i32_1 = arith.constant 0 : i32
    return %c0_i32, %c0_i32_0 : i32, i32
  }
  func.func @transform_1(%arg0: i32) -> (i32, i32) {
    %c0_i32 = arith.constant 0 : i32
    %c0_i32_0 = arith.constant 0 : i32
    %c0_i32_1 = arith.constant 0 : i32
    return %c0_i32, %c0_i32_0 : i32, i32
  }
  func.func @transform_2(%arg0: i32) -> (i32, i32) {
    %c0_i32 = arith.constant 0 : i32
    %c0_i32_0 = arith.constant 0 : i32
    return %c0_i32, %arg0 : i32, i32
  }
  func.func @transform_3(%arg0: i32) -> (i32, i32) {
    %c0_i32 = arith.constant 0 : i32
    %c0_i32_0 = arith.constant 0 : i32
    %c0_i32_1 = arith.constant 0 : i32
    return %c0_i32, %c0_i32_0 : i32, i32
  }
}

</mosaic_0001>

<llo_original>
// kernel: infonce_forward.1
$region0: #{infonce_forward.1}
  #allocation0 [shape = 'u32[]', space=smem, size = 0x4, offset = 0x4, fixed_abs, tag = 'smem constant byte address 0x4 - core index']
  #allocation1 [shape = 'u32[144,128]{1,0:T(1,128)}', space=vmem, size = 0x12000, scoped, tag = 'internal scratch']
  #allocation2 [shape = 'f32[1,8]{1,0:T(1,128)}', space=vmem, size = 0x200, scoped, tag = 'scratch operand']
  #allocation3 [shape = 'f32[1,8]{1,0:T(1,128)}', space=vmem, size = 0x200, scoped, tag = 'scratch operand']
  #allocation4 [shape = 'f32[1,8]{1,0:T(1,128)}', space=vmem, size = 0x200, scoped, tag = 'scratch operand']
  %s0 = inlined_call_operand.vmem [shape: f32[8,8], index: 0, kind: input, shape index: {}]
  %s1 = inlined_call_operand.vmem [shape: f32[8,16], index: 1, kind: input, shape index: {}]
  %s2 = inlined_call_operand.vmem [shape: f32[8,8], index: 2, kind: input, shape index: {}]
  %s3 = inlined_call_operand.hbm [shape: f32[1,1], index: 3, kind: output, shape index: {}]
  %s4 = sld [smem:[#allocation0]]
  $region30: #{infonce_forward.1} parent=0
    _
  %s6 = ssub.s32 1, %s4
  %s7 = scalar_select 0, %s6, %s4
  $region1: #{infonce_forward.1} parent=0
    #allocation5 [shape = 'u8[512]{0}', space=vmem, size = 0x400, scoped, tag = 'output window, operand 0, single buffered']
    #allocation6 [shape = 's32[1]{0}', space=sflag, size = 0x4, scoped, tag = 'scoped memory for infonce_forward.1']
    %8 = vsyncpa [#allocation6], 0
    // Predicated region
    $region2: #{infonce_forward.1} parent=1 // pred_check
      _
    $region3: #{infonce_forward.1} parent=1 // pred_check_branch
      %10 = sbr.rel (0) target = $region5
    $region4: #{infonce_forward.1} parent=1 // pred_region
      _
    $region5: #{infonce_forward.1} parent=1 // pred_fallthru
      _
    // Predicated region
    $region6: #{infonce_forward.1} parent=1 // pred_check
      _
    $region7: #{infonce_forward.1} parent=1 // pred_check_branch
      %12 = sbr.rel (0) target = $region9
    $region8: #{infonce_forward.1} parent=1 // pred_region
      _
    $region9: #{infonce_forward.1} parent=1 // pred_fallthru
      _
    // Predicated region
    $region10: #{infonce_forward.1} parent=1 // pred_check
      _
    $region11: #{infonce_forward.1} parent=1 // pred_check_branch
      %14 = sbr.rel (0) target = $region13
    $region12: #{infonce_forward.1} parent=1 // pred_region
      _
    $region13: #{infonce_forward.1} parent=1 // pred_fallthru
      _
    %p15 = scmp.eq.s32.totalorder 0, 0
    // Predicated region
    $region14: #{infonce_forward.1} parent=1 // pred_check
      %p16 = pneg %p15
    $region15: #{infonce_forward.1} parent=1 // pred_check_branch
      %18 = sbr.rel (%p16) target = $region17
    $region16: #{infonce_forward.1} parent=1 // pred_region
      %vm19 = vcmask 57344
      %20 = vst.msk [vmem:[#allocation2] sm:$0x1] %vm19, 0.0
      %21 = vst.msk [vmem:[#allocation3] sm:$0x1] %vm19, 0.0
      %22 = vst.msk [vmem:[#allocation4] sm:$0x1] %vm19, 0.0
    $region17: #{infonce_forward.1} parent=1 // pred_fallthru
      _
    %v23 = vld [vmem:[%s0] sm:$0xff]
    %v24 = vld [vmem:[%s2] sm:$0xff]
    %vm25 = vcmask 64512
    %v27 = vsel %vm25, %v23, 0
    %29 = vmatprep.subr.mxu0 0.0
    %30 = vmatpush1.msra.mxu0 %v24
    %31 = vmatprep.subr.mxu0 0.0
    %32 = vmatpush1.msra.mxu0 0.0
    %33 = vmatprep.subr.mxu0 0.0
    %34 = vmatpush1.msra.mxu0 0.0
    %35 = vmatprep.subr.mxu0 0.0
    %36 = vmatpush1.msra.mxu0 0.0
    %37 = vmatprep.subr.mxu0 0.0
    %38 = vmatpush1.msra.mxu0 0.0
    %39 = vmatprep.subr.mxu0 0.0
    %40 = vmatpush1.msra.mxu0 0.0
    %41 = vmatprep.subr.mxu0 0.0
    %42 = vmatpush1.msra.mxu0 0.0
    %43 = vmatprep.subr.mxu0 0.0
    %44 = vmatpush1.msra.mxu0 0.0
    %45 = vmatprep.subr.mxu0 0.0
    %46 = vmatpush1.msra.mxu0 0.0
    %47 = vmatprep.subr.mxu0 0.0
    %48 = vmatpush1.msra.mxu0 0.0
    %49 = vmatprep.subr.mxu0 0.0
    %50 = vmatpush1.msra.mxu0 0.0
    %51 = vmatprep.subr.mxu0 0.0
    %52 = vmatpush1.msra.mxu0 0.0
    %53 = vmatprep.subr.mxu0 0.0
    %54 = vmatpush1.msra.mxu0 0.0
    %55 = vmatprep.subr.mxu0 0.0
    %56 = vmatpush1.msra.mxu0 0.0
    %57 = vmatprep.subr.mxu0 0.0
    %58 = vmatpush1.msra.mxu0 0.0
    %59 = vmatprep.subr.mxu0 0.0
    %60 = vmatpush1.msra.mxu0 0.0
    %61 = vmatprep.subr.mxu0 0.0
    %62 = vmatpush1.msra.mxu0 0.0
    %63 = vmatprep.subr.mxu0 0.0
    %64 = vmatpush1.msra.mxu0 0.0
    %65 = vmatprep.subr.mxu0 0.0
    %66 = vmatpush1.msra.mxu0 0.0
    %67 = vmatprep.subr.mxu0 0.0
    %68 = vmatpush1.msra.mxu0 0.0
    %69 = vmatprep.subr.mxu0 0.0
    %70 = vmatpush1.msra.mxu0 0.0
    %71 = vmatprep.subr.mxu0 0.0
    %72 = vmatpush1.msra.mxu0 0.0
    %73 = vmatprep.subr.mxu0 0.0
    %74 = vmatpush1.msra.mxu0 0.0
    %75 = vmatprep.subr.mxu0 0.0
    %76 = vmatpush1.msra.mxu0 0.0
    %77 = vmatprep.subr.mxu0 0.0
    %78 = vmatpush1.msra.mxu0 0.0
    %79 = vmatprep.subr.mxu0 0.0
    %80 = vmatpush1.msra.mxu0 0.0
    %81 = vmatprep.subr.mxu0 0.0
    %82 = vmatpush1.msra.mxu0 0.0
    %83 = vmatprep.subr.mxu0 0.0
    %84 = vmatpush1.msra.mxu0 0.0
    %85 = vmatprep.subr.mxu0 0.0
    %86 = vmatpush1.msra.mxu0 0.0
    %87 = vmatprep.subr.mxu0 0.0
    %88 = vmatpush1.msra.mxu0 0.0
    %89 = vmatprep.subr.mxu0 0.0
    %90 = vmatpush1.msra.mxu0 0.0
    %91 = vmatprep.subr.mxu0 0.0
    %92 = vmatpush1.msra.mxu0 0.0
    %93 = vmatprep.mubr.f32.mxu0 0.0
    %94 = vmatmul.mubr.f32.gmra.mrb[0].mxu0 %v27
    %v95 = vpop.f32.mrb[0].mxu0
    %v96 = vadd.f32 0.0, %v95
    %v97 = vpop.f32.mrb[0].mxu0
    %98 = vdwg.mxu0
    %v99 = vmul.f32 %v24, %v96
    %v100 = vsel %vm25, %v99, 0.0
    %v101 = vrot.slane %v100, 4
    %v102 = vadd.f32 %v100, %v101
    %v103 = vrot.slane %v102, 2
    %v104 = vadd.f32 %v102, %v103
    %v105 = vrot.slane %v104, 1
    %v106 = vadd.f32 %v104, %v105
    %v107 = vrsqrt.pop %v106
    %v108 = vmul.f32 %v106, %v107
    %vm109 = vcmp.eq.f32.partialorder %v106, inf
    %v110 = vsel %vm109, %v106, %v108
    %vm111 = vcmp.eq.f32.partialorder %v106, 0.0
    %v112 = vand.u32 %v106, 2147483648
    %v113 = vsel %vm111, %v112, %v110
    %v114 = vmul.f32 %v113, 0.01
    %v115 = vld [vmem:[#allocation2] sm:$0x1]
    %v116 = vmax.f32 %v115, %v114
    %v117 = vsub.f32 %v115, %v116
    %v118 = vmul.f32 %v117, 1.442695
    %v119 = vpow.pop %v118
    %v120 = vsub.f32 %v114, %v116
    %v121 = vmul.f32 %v120, 1.442695
    %v122 = vpow.pop %v121
    %v123 = vld [vmem:[#allocation3] sm:$0x1]
    %v124 = vmul.f32 %v119, %v123
    %v125 = vadd.f32 %v124, %v122
    %vm126 = vcmask 57344
    %127 = vst.msk [vmem:[#allocation3] sm:$0x1] %vm126, %v125
    %v128 = vld [vmem:[#allocation4] sm:$0x1]
    %v129 = vadd.f32 %v128, %v114
    %130 = vst.msk [vmem:[#allocation4] sm:$0x1] %vm126, %v129
    %131 = vst.msk [vmem:[#allocation2] sm:$0x1] %vm126, %v116
    // Predicated region
    $region18: #{infonce_forward.1} parent=1 // pred_check
      %p132 = pneg %p15
    $region19: #{infonce_forward.1} parent=1 // pred_check_branch
      %134 = sbr.rel (%p132) target = $region21
    $region20: #{infonce_forward.1} parent=1 // pred_region
      %v135 = vld [vmem:[#allocation2] sm:$0x1]
      %v136 = vsel %vm126, %v135, -inf
      %137 = vmax.xlane.f32.xlu0 %v136
      %v138 = vpop.xlane.xlu0 %137
      %v139 = vld [vmem:[#allocation3] sm:$0x1]
      %v140 = vsub.f32 %v135, %v138
      %v141 = vmul.f32 %v140, 1.442695
      %v142 = vpow.pop %v141
      %v143 = vmul.f32 %v139, %v142
      %v144 = vsel %vm126, %v143, 0.0
      %145 = vadd.xlane.f32.xlu0 %v144
      %v146 = vpop.xlane.xlu0 %145
      %v147 = vld [vmem:[#allocation4] sm:$0x1]
      %v148 = vsel %vm126, %v147, 0.0
      %149 = vadd.xlane.f32.xlu0 %v148
      %v150 = vpop.xlane.xlu0 %149
      %v151 = vld [vmem:[%s1] sm:$0xff]
      %152 = vmatprep.subr.mxu0 0.0
      %153 = vmatpush1.msra.mxu0 %v151
      %154 = vmatprep.subr.mxu0 0.0
      %155 = vmatpush1.msra.mxu0 0.0
      %156 = vmatprep.subr.mxu0 0.0
      %157 = vmatpush1.msra.mxu0 0.0
      %158 = vmatprep.subr.mxu0 0.0
      %159 = vmatpush1.msra.mxu0 0.0
      %160 = vmatprep.subr.mxu0 0.0
      %161 = vmatpush1.msra.mxu0 0.0
      %162 = vmatprep.subr.mxu0 0.0
      %163 = vmatpush1.msra.mxu0 0.0
      %164 = vmatprep.subr.mxu0 0.0
      %165 = vmatpush1.msra.mxu0 0.0
      %166 = vmatprep.subr.mxu0 0.0
      %167 = vmatpush1.msra.mxu0 0.0
      %168 = vmatprep.subr.mxu0 0.0
      %169 = vmatpush1.msra.mxu0 0.0
      %170 = vmatprep.subr.mxu0 0.0
      %171 = vmatpush1.msra.mxu0 0.0
      %172 = vmatprep.subr.mxu0 0.0
      %173 = vmatpush1.msra.mxu0 0.0
      %174 = vmatprep.subr.mxu0 0.0
      %175 = vmatpush1.msra.mxu0 0.0
      %176 = vmatprep.subr.mxu0 0.0
      %177 = vmatpush1.msra.mxu0 0.0
      %178 = vmatprep.subr.mxu0 0.0
      %179 = vmatpush1.msra.mxu0 0.0
      %180 = vmatprep.subr.mxu0 0.0
      %181 = vmatpush1.msra.mxu0 0.0
      %182 = vmatprep.subr.mxu0 0.0
      %183 = vmatpush1.msra.mxu0 0.0
      %184 = vmatprep.subr.mxu0 0.0
      %185 = vmatpush1.msra.mxu0 0.0
      %186 = vmatprep.subr.mxu0 0.0
      %187 = vmatpush1.msra.mxu0 0.0
      %188 = vmatprep.subr.mxu0 0.0
      %189 = vmatpush1.msra.mxu0 0.0
      %190 = vmatprep.subr.mxu0 0.0
      %191 = vmatpush1.msra.mxu0 0.0
      %192 = vmatprep.subr.mxu0 0.0
      %193 = vmatpush1.msra.mxu0 0.0
      %194 = vmatprep.subr.mxu0 0.0
      %195 = vmatpush1.msra.mxu0 0.0
      %196 = vmatprep.subr.mxu0 0.0
      %197 = vmatpush1.msra.mxu0 0.0
      %198 = vmatprep.subr.mxu0 0.0
      %199 = vmatpush1.msra.mxu0 0.0
      %200 = vmatprep.subr.mxu0 0.0
      %201 = vmatpush1.msra.mxu0 0.0
      %202 = vmatprep.subr.mxu0 0.0
      %203 = vmatpush1.msra.mxu0 0.0
      %204 = vmatprep.subr.mxu0 0.0
      %205 = vmatpush1.msra.mxu0 0.0
      %206 = vmatprep.subr.mxu0 0.0
      %207 = vmatpush1.msra.mxu0 0.0
      %208 = vmatprep.subr.mxu0 0.0
      %209 = vmatpush1.msra.mxu0 0.0
      %210 = vmatprep.subr.mxu0 0.0
      %211 = vmatpush1.msra.mxu0 0.0
      %212 = vmatprep.subr.mxu0 0.0
      %213 = vmatpush1.msra.mxu0 0.0
      %214 = vmatprep.subr.mxu0 0.0
      %215 = vmatpush1.msra.mxu0 0.0
      %216 = vmatprep.mubr.f32.mxu0 0.0
      %217 = vmatmul.mubr.f32.gmra.mrb[0].mxu0 %v27
      %v218 = vpop.f32.mrb[0].mxu0
      %v219 = vadd.f32 0.0, %v218
      %v220 = vpop.f32.mrb[0].mxu0
      %221 = vdwg.mxu0
      %v222 = vmul.f32 %v151, %v219
      %vm223 = vcmask 130048
      %v224 = vsel %vm223, %v222, 0.0
      %v225 = vrot.slane %v224, 4
      %v226 = vadd.f32 %v224, %v225
      %v227 = vrot.slane %v226, 2
      %v228 = vadd.f32 %v226, %v227
      %v229 = vrot.slane %v228, 1
      %v230 = vadd.f32 %v228, %v229
      %v231 = vrsqrt.pop %v230
      %v232 = vmul.f32 %v230, %v231
      %vm233 = vcmp.eq.f32.partialorder %v230, inf
      %v234 = vsel %vm233, %v230, %v232
      %vm235 = vcmp.eq.f32.partialorder %v230, 0.0
      %v236 = vand.u32 %v230, 2147483648
      %v237 = vsel %vm235, %v236, %v234
      %v238 = vmul.f32 %v237, 0.01
      %v239 = vmax.f32 %v238, %v138
      %v240 = vsub.f32 %v238, %v239
      %v241 = vmul.f32 %v240, 1.442695
      %v242 = vpow.pop %v241
      %v243 = vsub.f32 %v138, %v239
      %v244 = vmul.f32 %v243, 1.442695
      %v245 = vpow.pop %v244
      %v246 = vmul.f32 %v146, %v245
      %v247 = vadd.f32 %v242, %v246
      %v248 = vsub.f32 0.0, %v239
      %v249 = vmul.f32 %v248, 1.442695
      %v250 = vpow.pop %v249
      %v251 = vmul.f32 %v250, 1e-12
      %v252 = vadd.f32 %v247, %v251
      %v253 = vlog2.pop %v252
      %v254 = vmul.f32 %v253, 0.6931472
      %v255 = vadd.f32 %v239, %v254
      %v256 = vadd.f32 %v238, %v150
      %v257 = vmul.f32 %v255, 9.0
      %v258 = vsub.f32 %v256, %v257
      %vm259 = vcmask 122880
      %v260 = vsel %vm259, %v258, 0.0
      %261 = vadd.xlane.f32.xlu0 %v260
      %v262 = vpop.xlane.xlu0 %261
      %v263 = vsub.f32 0.0, %v262
      %v264 = vrcp.pop 144.0
      %v265 = vmul.f32 %v263, %v264
      %vm266 = vcmask 0
      %267 = vst.msk [vmem:[#allocation5] sm:$0x1] %vm266, %v265
    $region21: #{infonce_forward.1} parent=1 // pred_fallthru
      _
    // Predicated region
    $region22: #{infonce_forward.1} parent=1 // pred_check
      _
    $region23: #{infonce_forward.1} parent=1 // pred_check_branch
      %269 = sbr.rel (0) target = $region25
    $region24: #{infonce_forward.1} parent=1 // pred_region
      %s271 = ssub.s32 16, 16
      %272 = vsyncadd [#allocation6], %s271
      %s274 = sshll.u32 [#allocation5], 4
      %s275 = int_to_ptr.vmem [resolvable:$true] %s274
      %277 = dma.vmem_to_hbm [thread:$0]  %s275, 16, %s3, [#allocation6]
    $region25: #{infonce_forward.1} parent=1 // pred_fallthru
      _
    // Predicated region
    $region26: #{infonce_forward.1} parent=1 // pred_check
      _
    $region27: #{infonce_forward.1} parent=1 // pred_check_branch
      %279 = sbr.rel (0) target = $region29
    $region28: #{infonce_forward.1} parent=1 // pred_region
      %280 = dma.done [#allocation6], 16
    $region29: #{infonce_forward.1} parent=1 // pred_fallthru
      _
    %281 = vsyncpa [#allocation6], 1

</llo_original>
